<compile_context>
chip_gen: v5e
topology: v5e:2x2
jax: 0.10.0
libtpu: 0.0.40
codegen_flags: <defaults>
</compile_context>

<pallas_src>
import jax
import jax.numpy as jnp
from jax.experimental import pallas as pl
from jax.experimental.pallas import tpu as pltpu

LN_EPS = 1e-5
VMEM_LIMIT = 48 * 1024 * 1024   # safe on v5e/v6e (128 MiB) and v7x (64 MiB)


def _round_up(x, m):
    return ((x + m - 1) // m) * m


def _nbytes(a):
    return int(a.size * a.dtype.itemsize)


# ---------------------------------------------------------------------------
# Kernel 1: trunk = ShrinkNorm -> FeedForwardNetwork -> AddNorm  (fused)
# ---------------------------------------------------------------------------
def _make_trunk_kernel(compute_dtype):
    def trunk_kernel(x_ref, w1_ref, b1_ref, w2_ref, b2_ref, g1_ref, be1_ref,
                     w3_ref, b3_ref, w4_ref, b4_ref, g2_ref, be2_ref, o_ref):
        x = x_ref[...].astype(compute_dtype)

        # ShrinkNorm: linear1 -> ReLU -> (dropout=id) -> linear2 -> LayerNorm
        h = jnp.maximum(
            jnp.dot(x, w1_ref[...].astype(compute_dtype),
                    preferred_element_type=jnp.float32) + b1_ref[...], 0.0)
        s = jnp.dot(h.astype(compute_dtype), w2_ref[...].astype(compute_dtype),
                    preferred_element_type=jnp.float32) + b2_ref[...]
        mu = jnp.mean(s, axis=-1, keepdims=True)
        var = jnp.mean((s - mu) * (s - mu), axis=-1, keepdims=True)
        shrink = (s - mu) * jax.lax.rsqrt(var + LN_EPS) * g1_ref[...] + be1_ref[...]

        # FeedForwardNetwork: linear1 -> ReLU -> (dropout=id) -> linear2
        f = jnp.maximum(
            jnp.dot(shrink.astype(compute_dtype), w3_ref[...].astype(compute_dtype),
                    preferred_element_type=jnp.float32) + b3_ref[...], 0.0)
        f = jnp.dot(f.astype(compute_dtype), w4_ref[...].astype(compute_dtype),
                    preferred_element_type=jnp.float32) + b4_ref[...]

        # AddNorm: LayerNorm(dropout(Y) + X)
        z = f + shrink
        mu2 = jnp.mean(z, axis=-1, keepdims=True)
        var2 = jnp.mean((z - mu2) * (z - mu2), axis=-1, keepdims=True)
        o_ref[...] = ((z - mu2) * jax.lax.rsqrt(var2 + LN_EPS) * g2_ref[...]
                      + be2_ref[...]).astype(o_ref.dtype)
    return trunk_kernel


def trunk_forward(x, tp, *, tm=256, compute_dtype=jnp.float32):
    """x: [N_pad, D_bert] -> projected_output: [N_pad, D_model]."""
    N, d_bert = x.shape
    sh = tp["w1"].shape[-1]
    d_model = tp["g2"].shape[-1]
    d_ff = tp["w3"].shape[-1]

    # Cast matmul weights to the compute dtype in the wrapper (halves weight
    # DMA traffic in bf16 mode); biases / LayerNorm params stay f32.
    def cast_w(a):
        return a.astype(compute_dtype)
    weights = [cast_w(tp["w1"]), tp["b1"], cast_w(tp["w2"]), tp["b2"],
               tp["g1"], tp["be1"],
               cast_w(tp["w3"]), tp["b3"], cast_w(tp["w4"]), tp["b4"],
               tp["g2"], tp["be2"]]

    flops = 2 * N * (d_bert * sh + sh * d_model + d_model * d_ff + d_ff * d_model)
    bytes_accessed = _nbytes(x) + sum(_nbytes(w) for w in weights) + N * d_model * 4
    cost = pl.CostEstimate(flops=int(flops), transcendentals=int(2 * N),
                           bytes_accessed=int(bytes_accessed))

    def full_spec(a):
        return pl.BlockSpec(a.shape, lambda i: (0, 0))
    # TODO(synk): weight BlockSpecs (constant index_map) could use
    # pipeline_mode=pl.Buffered(1) to halve weight VMEM on v7x's 64 MiB.

    return pl.pallas_call(
        _make_trunk_kernel(compute_dtype),
        out_shape=jax.ShapeDtypeStruct((N, d_model), jnp.float32),
        grid=(N // tm,),
        in_specs=[pl.BlockSpec((tm, d_bert), lambda i: (i, 0))]
                 + [full_spec(a) for a in weights],
        out_specs=pl.BlockSpec((tm, d_model), lambda i: (i, 0)),
        compiler_params=pltpu.CompilerParams(
            dimension_semantics=("parallel",),
            vmem_limit_bytes=VMEM_LIMIT),
        cost_estimate=cost,
    )(x, *weights)


# ---------------------------------------------------------------------------
# Kernel 2: ALL classification heads fused.  grid = (row_tiles, H).
# Output block stays resident across the head axis; the per-token head
# dispatch, pad handling and the "predictions" fill convention are all done
# in-kernel on a lane-dense (tm, 128) f32 block.
#   head_id encoding:  -2 = pad token, -1 = no head, >=0 = head index.
# ---------------------------------------------------------------------------
def _make_heads_kernel(compute_dtype):
    def heads_kernel(nspell_ref, head_id_ref, proj_ref,
                     w1_ref, b1_ref, w2_ref, b2_ref, o_ref):
        h = pl.program_id(1)
        tm, out_pad = o_ref.shape
        hid = head_id_ref[...]                                    # (tm, 1) i32
        col = jax.lax.broadcasted_iota(jnp.int32, (tm, out_pad), 1)

        @pl.when(h == 0)
        def _init():
            # default row [1, -1, -1, ...] for tokens without a head,
            # all -1 for pad tokens (head_id == -2).
            base = jnp.where(col == 0, 1.0, -1.0)
            base = jnp.where(hid >= -1, base, -1.0)
            o_ref[...] = base.astype(o_ref.dtype)

        # Head h: Linear -> ReLU -> (dropout=id) -> Linear -> Softmax
        x = proj_ref[...].astype(compute_dtype)
        hdn = jnp.maximum(
            jnp.dot(x, w1_ref[0].astype(compute_dtype),
                    preferred_element_type=jnp.float32) + b1_ref[0], 0.0)
        logits = jnp.dot(hdn.astype(compute_dtype),
                         w2_ref[0].astype(compute_dtype),
                         preferred_element_type=jnp.float32) + b2_ref[0]

        nv = nspell_ref[h]                       # scalar-prefetched valid width
        valid = col < nv
        masked = jnp.where(valid, logits, -jnp.inf)
        m = jnp.max(masked, axis=-1, keepdims=True)
        e = jnp.where(valid, jnp.exp(masked - m), 0.0)
        p = e / jnp.sum(e, axis=-1, keepdims=True)
        probs = jnp.where(valid, p, -1.0)

        # Per-token dispatch: only rows whose head_id == h take this head.
        o_ref[...] = jnp.where(hid == h, probs, o_ref[...]).astype(o_ref.dtype)
    return heads_kernel


def heads_forward(proj, heads_w1, heads_b1, heads_w2, heads_b2, nspell,
                  head_id2d, *, tm=256, compute_dtype=jnp.float32):
    """proj: [N_pad, d_model] -> lane-dense predictions [N_pad, out_pad]."""
    N, d_model = proj.shape
    H, _, hid_max = heads_w1.shape
    out_pad = heads_w2.shape[-1]

    w1 = heads_w1.astype(compute_dtype)
    w2 = heads_w2.astype(compute_dtype)

    flops = 2 * N * H * (d_model * hid_max + hid_max * out_pad)
    bytes_accessed = (_nbytes(proj) + _nbytes(w1) + _nbytes(heads_b1)
                      + _nbytes(w2) + _nbytes(heads_b2) + _nbytes(head_id2d)
                      + N * out_pad * 4)
    cost = pl.CostEstimate(flops=int(flops), transcendentals=int(N * H * out_pad),
                           bytes_accessed=int(bytes_accessed))

    grid_spec = pltpu.PrefetchScalarGridSpec(
        num_scalar_prefetch=1,
        grid=(N // tm, H),
        in_specs=[
            pl.BlockSpec((tm, 1), lambda i, h, ns: (i, 0)),              # head_id
            pl.BlockSpec((tm, d_model), lambda i, h, ns: (i, 0)),        # proj
            pl.BlockSpec((1, d_model, hid_max), lambda i, h, ns: (h, 0, 0)),
            pl.BlockSpec((1, 1, hid_max), lambda i, h, ns: (h, 0, 0)),
            pl.BlockSpec((1, hid_max, out_pad), lambda i, h, ns: (h, 0, 0)),
            pl.BlockSpec((1, 1, out_pad), lambda i, h, ns: (h, 0, 0)),
        ],
        out_specs=pl.BlockSpec((tm, out_pad), lambda i, h, ns: (i, 0)),
    )

    return pl.pallas_call(
        _make_heads_kernel(compute_dtype),
        out_shape=jax.ShapeDtypeStruct((N, out_pad), jnp.float32),
        grid_spec=grid_spec,
        compiler_params=pltpu.CompilerParams(
            dimension_semantics=("parallel", "arbitrary"),
            vmem_limit_bytes=VMEM_LIMIT),
        cost_estimate=cost,
    )(nspell, head_id2d, proj, w1, heads_b1, w2, heads_b2)


# ---------------------------------------------------------------------------
# Full model forward (glue in plain JAX, hot paths in Pallas)
# ---------------------------------------------------------------------------
def translator_forward(input_ids, params, *, tm=256, compute_dtype=jnp.float32):
    B, L = input_ids.shape
    max_spell = params["max_num_spellings"]
    N = B * L

    # Clamp row tile to the (8-aligned) problem size and pad rows to tile.
    tm = max(8, min(tm, _round_up(N, 8)))
    N_pad = _round_up(N, tm)

    seq = params["bert_emb"][input_ids].reshape(N, -1)        # [N, D_bert]
    if N_pad != N:
        seq = jnp.pad(seq, ((0, N_pad - N), (0, 0)))

    proj = trunk_forward(seq, params["trunk"], tm=tm,
                         compute_dtype=compute_dtype)          # [N_pad, D_model]

    head_id = params["head_id_table"][input_ids].reshape(N)    # -1 = no head
    head_id = jnp.where(input_ids.reshape(N) == params["pad_token_id"],
                        -2, head_id)                           # -2 = pad token
    if N_pad != N:
        head_id = jnp.pad(head_id, (0, N_pad - N), constant_values=-2)
    head_id2d = head_id[:, None].astype(jnp.int32)             # [N_pad, 1]

    preds_pad = heads_forward(proj, params["heads_w1"], params["heads_b1"],
                              params["heads_w2"], params["heads_b2"],
                              params["nspell"], head_id2d,
                              tm=tm, compute_dtype=compute_dtype)  # [N_pad, 128]

    return preds_pad[:N, :max_spell].reshape(B, L, max_spell)


# ---------------------------------------------------------------------------
# Deterministic parameter construction (synthetic; shapes from __init__)
# ---------------------------------------------------------------------------
def init_params(key, vocab_size, d_bert, shrink_hidden, d_model, d_ff,
                small_head, large_head, max_spell, spelling_counts,
                num_spelling_threshold, pad_token_id, out_pad=128):
    keys = iter(jax.random.split(key, 64))

    def lin(d_in, d_out):
        w = 0.05 * jax.random.normal(next(keys), (d_in, d_out), jnp.float32)
        b = 0.01 * jax.random.normal(next(keys), (1, d_out), jnp.float32)
        return w, b

    trunk = {}
    trunk["w1"], trunk["b1"] = lin(d_bert, shrink_hidden)      # ShrinkNorm.linear1
    trunk["w2"], trunk["b2"] = lin(shrink_hidden, d_model)     # ShrinkNorm.linear2
    trunk["g1"] = jnp.ones((1, d_model), jnp.float32)          # ShrinkNorm.ln
    trunk["be1"] = jnp.zeros((1, d_model), jnp.float32)
    trunk["w3"], trunk["b3"] = lin(d_model, d_ff)              # FFN.linear1
    trunk["w4"], trunk["b4"] = lin(d_ff, d_model)              # FFN.linear2
    trunk["g2"] = jnp.ones((1, d_model), jnp.float32)          # AddNorm.ln
    trunk["be2"] = jnp.zeros((1, d_model), jnp.float32)

    hid_max = max(small_head, large_head)
    w1s, b1s, w2s, b2s, nspell = [], [], [], [], []
    head_id_table = [-1] * vocab_size
    for tok_id in sorted(spelling_counts):
        n_spell = spelling_counts[tok_id]
        if n_spell <= 1:
            continue
        hid = small_head if n_spell <= num_spelling_threshold else large_head
        w1, b1 = lin(d_model, hid)
        w2, b2 = lin(hid, n_spell)
        # zero-pad to common hidden width and lane-dense output width
        w1p = jnp.zeros((d_model, hid_max), jnp.float32).at[:, :hid].set(w1)
        b1p = jnp.zeros((1, hid_max), jnp.float32).at[:, :hid].set(b1)
        w2p = jnp.zeros((hid_max, out_pad), jnp.float32).at[:hid, :n_spell].set(w2)
        b2p = jnp.zeros((1, out_pad), jnp.float32).at[:, :n_spell].set(b2)
        head_id_table[tok_id] = len(nspell)
        w1s.append(w1p); b1s.append(b1p); w2s.append(w2p); b2s.append(b2p)
        nspell.append(n_spell)

    bert_emb = 0.1 * jax.random.normal(next(keys), (vocab_size, d_bert),
                                       jnp.float32)

    return {
        "trunk": trunk,
        "heads_w1": jnp.stack(w1s),            # [H, d_model, hid_max]
        "heads_b1": jnp.stack(b1s),            # [H, 1, hid_max]
        "heads_w2": jnp.stack(w2s),            # [H, hid_max, out_pad]
        "heads_b2": jnp.stack(b2s),            # [H, 1, out_pad]
        "nspell": jnp.asarray(nspell, jnp.int32),
        "head_id_table": jnp.asarray(head_id_table, jnp.int32),
        "bert_emb": bert_emb,
        "pad_token_id": pad_token_id,
        "max_num_spellings": max_spell,
    }


# ---------------------------------------------------------------------------
# Pure-JAX reference (same math, f32, HIGHEST precision) for correctness check
# ---------------------------------------------------------------------------
def reference_forward(input_ids, params):
    PREC = jax.lax.Precision.HIGHEST

    def ln(z, g, b):
        mu = jnp.mean(z, -1, keepdims=True)
        var = jnp.mean((z - mu) ** 2, -1, keepdims=True)
        return (z - mu) * jax.lax.rsqrt(var + LN_EPS) * g + b

    B, L = input_ids.shape
    N = B * L
    tp = params["trunk"]
    x = params["bert_emb"][input_ids].reshape(N, -1)
    s = jnp.dot(jnp.maximum(jnp.dot(x, tp["w1"], precision=PREC) + tp["b1"], 0.0),
                tp["w2"], precision=PREC) + tp["b2"]
    shrink = ln(s, tp["g1"], tp["be1"])
    f = jnp.dot(jnp.maximum(jnp.dot(shrink, tp["w3"], precision=PREC) + tp["b3"], 0.0),
                tp["w4"], precision=PREC) + tp["b4"]
    proj = ln(f + shrink, tp["g2"], tp["be2"])

    max_spell = params["max_num_spellings"]
    head_id = params["head_id_table"][input_ids].reshape(N)
    pad_mask = (input_ids == params["pad_token_id"]).reshape(N)
    H = params["heads_w1"].shape[0]
    outs = []
    for h in range(H):
        n = int(params["nspell"][h])
        hdn = jnp.maximum(jnp.dot(proj, params["heads_w1"][h], precision=PREC)
                          + params["heads_b1"][h], 0.0)
        logits = (jnp.dot(hdn, params["heads_w2"][h], precision=PREC)
                  + params["heads_b2"][h])[:, :n]
        probs = jax.nn.softmax(logits, axis=-1)
        outs.append(jnp.concatenate(
            [probs, jnp.full((N, max_spell - n), -1.0, jnp.float32)], axis=-1))
    outs = jnp.stack(outs, 0)                                   # [H, N, max_spell]
    gathered = outs[jnp.clip(head_id, 0, H - 1), jnp.arange(N)]
    default_row = jnp.full((max_spell,), -1.0, jnp.float32).at[0].set(1.0)
    preds = jnp.where(head_id[:, None] >= 0, gathered, default_row[None, :])
    preds = jnp.where(pad_mask[:, None], -1.0, preds)
    return preds.reshape(B, L, max_spell)


if __name__ == "__main__":
    # Small synthetic configuration (feature dims are multiples of 128, as the
    # real module's are: bert=768, shrink=512, model=512, ff=512, heads 128/256).
    B, L = 2, 8
    D_BERT, SHRINK_H, D_MODEL, D_FF = 256, 256, 128, 256
    SMALL_HEAD, LARGE_HEAD = 128, 256
    MAX_SPELL, THRESH = 7, 3
    PAD_ID = 0
    # vocab: id 0 = [PAD]; id 1 -> 2 spellings (small head); id 2 -> 5 spellings
    # (large head); id 3 -> 1 spelling (no head); id 4 -> 3 spellings (small head)
    spelling_counts = {0: 0, 1: 2, 2: 5, 3: 1, 4: 3}
    VOCAB_SIZE = 5

    key = jax.random.PRNGKey(0)
    params = init_params(key, VOCAB_SIZE, D_BERT, SHRINK_H, D_MODEL, D_FF,
                         SMALL_HEAD, LARGE_HEAD, MAX_SPELL, spelling_counts,
                         THRESH, PAD_ID)

    input_ids = jnp.array([[1, 2, 3, 4, 1, 2, 0, 0],
                           [4, 3, 2, 1, 0, 0, 0, 0]], dtype=jnp.int32)

    ref = jax.block_until_ready(reference_forward(input_ids, params))

    # f32 path: strict correctness check.
    preds = jax.block_until_ready(
        translator_forward(input_ids, params, compute_dtype=jnp.float32))
    assert preds.shape == (B, L, MAX_SPELL)
    assert jnp.max(jnp.abs(preds - ref)) < 5e-4

    # bf16-operand path (f32 accumulate): exercises the fast v6e/v7x MXU mode.
    preds_bf16 = jax.block_until_ready(
        translator_forward(input_ids, params, compute_dtype=jnp.bfloat16))
    assert preds_bf16.shape == (B, L, MAX_SPELL)
    assert jnp.max(jnp.abs(preds_bf16 - ref)) < 1e-1

    print("KERNEL_OK")
</pallas_src>

<mosaic_0001>
module attributes {stable_mosaic.version = 11 : i64} {
  func.func @trunk_kernel(%arg0: i32, %arg1: memref<16x256xf32, #tpu.memory_space<vmem>>, %arg2: memref<256x256xf32, #tpu.memory_space<vmem>>, %arg3: memref<1x256xf32, #tpu.memory_space<vmem>>, %arg4: memref<256x128xf32, #tpu.memory_space<vmem>>, %arg5: memref<1x128xf32, #tpu.memory_space<vmem>>, %arg6: memref<1x128xf32, #tpu.memory_space<vmem>>, %arg7: memref<1x128xf32, #tpu.memory_space<vmem>>, %arg8: memref<128x256xf32, #tpu.memory_space<vmem>>, %arg9: memref<1x256xf32, #tpu.memory_space<vmem>>, %arg10: memref<256x128xf32, #tpu.memory_space<vmem>>, %arg11: memref<1x128xf32, #tpu.memory_space<vmem>>, %arg12: memref<1x128xf32, #tpu.memory_space<vmem>>, %arg13: memref<1x128xf32, #tpu.memory_space<vmem>>, %arg14: memref<16x128xf32, #tpu.memory_space<vmem>>) attributes {dimension_semantics = [#tpu.dimension_semantics<parallel>], iteration_bounds = array<i64: 1>, scalar_prefetch = 0 : i64, scratch_operands = 0 : i64, tpu.core_type = #tpu.core_type<tc>, window_params = [{transform_indices = @transform_0, window_bounds = array<i64: 16, 256>}, {pipeline_mode = #tpu.pipeline_mode<synchronous>, transform_indices = @transform_1, window_bounds = array<i64: 256, 256>}, {pipeline_mode = #tpu.pipeline_mode<synchronous>, transform_indices = @transform_2, window_bounds = array<i64: 1, 256>}, {pipeline_mode = #tpu.pipeline_mode<synchronous>, transform_indices = @transform_3, window_bounds = array<i64: 256, 128>}, {pipeline_mode = #tpu.pipeline_mode<synchronous>, transform_indices = @transform_4, window_bounds = array<i64: 1, 128>}, {pipeline_mode = #tpu.pipeline_mode<synchronous>, transform_indices = @transform_5, window_bounds = array<i64: 1, 128>}, {pipeline_mode = #tpu.pipeline_mode<synchronous>, transform_indices = @transform_6, window_bounds = array<i64: 1, 128>}, {pipeline_mode = #tpu.pipeline_mode<synchronous>, transform_indices = @transform_7, window_bounds = array<i64: 128, 256>}, {pipeline_mode = #tpu.pipeline_mode<synchronous>, transform_indices = @transform_8, window_bounds = array<i64: 1, 256>}, {pipeline_mode = #tpu.pipeline_mode<synchronous>, transform_indices = @transform_9, window_bounds = array<i64: 256, 128>}, {pipeline_mode = #tpu.pipeline_mode<synchronous>, transform_indices = @transform_10, window_bounds = array<i64: 1, 128>}, {pipeline_mode = #tpu.pipeline_mode<synchronous>, transform_indices = @transform_11, window_bounds = array<i64: 1, 128>}, {pipeline_mode = #tpu.pipeline_mode<synchronous>, transform_indices = @transform_12, window_bounds = array<i64: 1, 128>}, {transform_indices = @transform_13, window_bounds = array<i64: 16, 128>}]} {
    %c0 = arith.constant 0 : index
    %c0_0 = arith.constant 0 : index
    %0 = vector.load %arg1[%c0, %c0_0] : memref<16x256xf32, #tpu.memory_space<vmem>>, vector<16x256xf32>
    %c0_1 = arith.constant 0 : index
    %c0_2 = arith.constant 0 : index
    %1 = vector.load %arg2[%c0_1, %c0_2] : memref<256x256xf32, #tpu.memory_space<vmem>>, vector<256x256xf32>
    %cst = arith.constant dense<0.000000e+00> : vector<16x256xf32>
    %2 = tpu.matmul %0, %1, %cst {dimension_numbers = #tpu.dot_dimension_numbers<[1], [0], [0], [1], [0, 0, 1, 1], [], []>} : vector<16x256xf32>, vector<256x256xf32>, vector<16x256xf32> -> vector<16x256xf32>
    %c0_3 = arith.constant 0 : index
    %c0_4 = arith.constant 0 : index
    %3 = vector.load %arg3[%c0_3, %c0_4] : memref<1x256xf32, #tpu.memory_space<vmem>>, vector<1x256xf32>
    %4 = vector.broadcast %3 : vector<1x256xf32> to vector<16x256xf32>
    %5 = arith.addf %2, %4 : vector<16x256xf32>
    %cst_5 = arith.constant 0.000000e+00 : f32
    %6 = vector.broadcast %cst_5 : f32 to vector<16x256xf32>
    %7 = arith.maximumf %5, %6 : vector<16x256xf32>
    %c0_6 = arith.constant 0 : index
    %c0_7 = arith.constant 0 : index
    %8 = vector.load %arg4[%c0_6, %c0_7] : memref<256x128xf32, #tpu.memory_space<vmem>>, vector<256x128xf32>
    %cst_8 = arith.constant dense<0.000000e+00> : vector<16x128xf32>
    %9 = tpu.matmul %7, %8, %cst_8 {dimension_numbers = #tpu.dot_dimension_numbers<[1], [0], [0], [1], [0, 0, 1, 1], [], []>} : vector<16x256xf32>, vector<256x128xf32>, vector<16x128xf32> -> vector<16x128xf32>
    %c0_9 = arith.constant 0 : index
    %c0_10 = arith.constant 0 : index
    %10 = vector.load %arg5[%c0_9, %c0_10] : memref<1x128xf32, #tpu.memory_space<vmem>>, vector<1x128xf32>
    %11 = vector.broadcast %10 : vector<1x128xf32> to vector<16x128xf32>
    %12 = arith.addf %9, %11 : vector<16x128xf32>
    %cst_11 = arith.constant dense<0.000000e+00> : vector<16xf32>
    %13 = vector.multi_reduction <add>, %12, %cst_11 [1] : vector<16x128xf32> to vector<16xf32>
    %14 = vector.shape_cast %13 : vector<16xf32> to vector<16x1xf32>
    %cst_12 = arith.constant 1.280000e+02 : f32
    %15 = vector.broadcast %cst_12 : f32 to vector<16x1xf32>
    %16 = arith.divf %14, %15 : vector<16x1xf32>
    %17 = vector.broadcast %16 : vector<16x1xf32> to vector<16x128xf32>
    %18 = arith.subf %12, %17 : vector<16x128xf32>
    %19 = vector.broadcast %16 : vector<16x1xf32> to vector<16x128xf32>
    %20 = arith.subf %12, %19 : vector<16x128xf32>
    %21 = arith.mulf %18, %20 : vector<16x128xf32>
    %cst_13 = arith.constant dense<0.000000e+00> : vector<16xf32>
    %22 = vector.multi_reduction <add>, %21, %cst_13 [1] : vector<16x128xf32> to vector<16xf32>
    %23 = vector.shape_cast %22 : vector<16xf32> to vector<16x1xf32>
    %cst_14 = arith.constant 1.280000e+02 : f32
    %24 = vector.broadcast %cst_14 : f32 to vector<16x1xf32>
    %25 = arith.divf %23, %24 : vector<16x1xf32>
    %26 = vector.broadcast %16 : vector<16x1xf32> to vector<16x128xf32>
    %27 = arith.subf %12, %26 : vector<16x128xf32>
    %cst_15 = arith.constant 9.99999974E-6 : f32
    %28 = vector.broadcast %cst_15 : f32 to vector<16x1xf32>
    %29 = arith.addf %25, %28 : vector<16x1xf32>
    %30 = math.rsqrt %29 : vector<16x1xf32>
    %31 = vector.broadcast %30 : vector<16x1xf32> to vector<16x128xf32>
    %32 = arith.mulf %27, %31 : vector<16x128xf32>
    %c0_16 = arith.constant 0 : index
    %c0_17 = arith.constant 0 : index
    %33 = vector.load %arg6[%c0_16, %c0_17] : memref<1x128xf32, #tpu.memory_space<vmem>>, vector<1x128xf32>
    %34 = vector.broadcast %33 : vector<1x128xf32> to vector<16x128xf32>
    %35 = arith.mulf %32, %34 : vector<16x128xf32>
    %c0_18 = arith.constant 0 : index
    %c0_19 = arith.constant 0 : index
    %36 = vector.load %arg7[%c0_18, %c0_19] : memref<1x128xf32, #tpu.memory_space<vmem>>, vector<1x128xf32>
    %37 = vector.broadcast %36 : vector<1x128xf32> to vector<16x128xf32>
    %38 = arith.addf %35, %37 : vector<16x128xf32>
    %c0_20 = arith.constant 0 : index
    %c0_21 = arith.constant 0 : index
    %39 = vector.load %arg8[%c0_20, %c0_21] : memref<128x256xf32, #tpu.memory_space<vmem>>, vector<128x256xf32>
    %cst_22 = arith.constant dense<0.000000e+00> : vector<16x256xf32>
    %40 = tpu.matmul %38, %39, %cst_22 {dimension_numbers = #tpu.dot_dimension_numbers<[1], [0], [0], [1], [0, 0, 1, 1], [], []>} : vector<16x128xf32>, vector<128x256xf32>, vector<16x256xf32> -> vector<16x256xf32>
    %c0_23 = arith.constant 0 : index
    %c0_24 = arith.constant 0 : index
    %41 = vector.load %arg9[%c0_23, %c0_24] : memref<1x256xf32, #tpu.memory_space<vmem>>, vector<1x256xf32>
    %42 = vector.broadcast %41 : vector<1x256xf32> to vector<16x256xf32>
    %43 = arith.addf %40, %42 : vector<16x256xf32>
    %cst_25 = arith.constant 0.000000e+00 : f32
    %44 = vector.broadcast %cst_25 : f32 to vector<16x256xf32>
    %45 = arith.maximumf %43, %44 : vector<16x256xf32>
    %c0_26 = arith.constant 0 : index
    %c0_27 = arith.constant 0 : index
    %46 = vector.load %arg10[%c0_26, %c0_27] : memref<256x128xf32, #tpu.memory_space<vmem>>, vector<256x128xf32>
    %cst_28 = arith.constant dense<0.000000e+00> : vector<16x128xf32>
    %47 = tpu.matmul %45, %46, %cst_28 {dimension_numbers = #tpu.dot_dimension_numbers<[1], [0], [0], [1], [0, 0, 1, 1], [], []>} : vector<16x256xf32>, vector<256x128xf32>, vector<16x128xf32> -> vector<16x128xf32>
    %c0_29 = arith.constant 0 : index
    %c0_30 = arith.constant 0 : index
    %48 = vector.load %arg11[%c0_29, %c0_30] : memref<1x128xf32, #tpu.memory_space<vmem>>, vector<1x128xf32>
    %49 = vector.broadcast %48 : vector<1x128xf32> to vector<16x128xf32>
    %50 = arith.addf %47, %49 : vector<16x128xf32>
    %51 = arith.addf %50, %38 : vector<16x128xf32>
    %cst_31 = arith.constant dense<0.000000e+00> : vector<16xf32>
    %52 = vector.multi_reduction <add>, %51, %cst_31 [1] : vector<16x128xf32> to vector<16xf32>
    %53 = vector.shape_cast %52 : vector<16xf32> to vector<16x1xf32>
    %cst_32 = arith.constant 1.280000e+02 : f32
    %54 = vector.broadcast %cst_32 : f32 to vector<16x1xf32>
    %55 = arith.divf %53, %54 : vector<16x1xf32>
    %56 = vector.broadcast %55 : vector<16x1xf32> to vector<16x128xf32>
    %57 = arith.subf %51, %56 : vector<16x128xf32>
    %58 = vector.broadcast %55 : vector<16x1xf32> to vector<16x128xf32>
    %59 = arith.subf %51, %58 : vector<16x128xf32>
    %60 = arith.mulf %57, %59 : vector<16x128xf32>
    %cst_33 = arith.constant dense<0.000000e+00> : vector<16xf32>
    %61 = vector.multi_reduction <add>, %60, %cst_33 [1] : vector<16x128xf32> to vector<16xf32>
    %62 = vector.shape_cast %61 : vector<16xf32> to vector<16x1xf32>
    %cst_34 = arith.constant 1.280000e+02 : f32
    %63 = vector.broadcast %cst_34 : f32 to vector<16x1xf32>
    %64 = arith.divf %62, %63 : vector<16x1xf32>
    %65 = vector.broadcast %55 : vector<16x1xf32> to vector<16x128xf32>
    %66 = arith.subf %51, %65 : vector<16x128xf32>
    %cst_35 = arith.constant 9.99999974E-6 : f32
    %67 = vector.broadcast %cst_35 : f32 to vector<16x1xf32>
    %68 = arith.addf %64, %67 : vector<16x1xf32>
    %69 = math.rsqrt %68 : vector<16x1xf32>
    %70 = vector.broadcast %69 : vector<16x1xf32> to vector<16x128xf32>
    %71 = arith.mulf %66, %70 : vector<16x128xf32>
    %c0_36 = arith.constant 0 : index
    %c0_37 = arith.constant 0 : index
    %72 = vector.load %arg12[%c0_36, %c0_37] : memref<1x128xf32, #tpu.memory_space<vmem>>, vector<1x128xf32>
    %73 = vector.broadcast %72 : vector<1x128xf32> to vector<16x128xf32>
    %74 = arith.mulf %71, %73 : vector<16x128xf32>
    %c0_38 = arith.constant 0 : index
    %c0_39 = arith.constant 0 : index
    %75 = vector.load %arg13[%c0_38, %c0_39] : memref<1x128xf32, #tpu.memory_space<vmem>>, vector<1x128xf32>
    %76 = vector.broadcast %75 : vector<1x128xf32> to vector<16x128xf32>
    %77 = arith.addf %74, %76 : vector<16x128xf32>
    %c0_40 = arith.constant 0 : index
    %c0_41 = arith.constant 0 : index
    %78 = vector.load %arg14[%c0_40, %c0_41] : memref<16x128xf32, #tpu.memory_space<vmem>>, vector<16x128xf32>
    tpu.vector_store %arg14[%c0_40, %c0_41], %77 {strides = array<i32>} : memref<16x128xf32, #tpu.memory_space<vmem>>, vector<16x128xf32>,
    return
  }
  func.func @transform_0(%arg0: i32) -> (i32, i32) {
    %c0_i32 = arith.constant 0 : i32
    %c0_i32_0 = arith.constant 0 : i32
    return %arg0, %c0_i32 : i32, i32
  }
  func.func @transform_1(%arg0: i32) -> (i32, i32) {
    %c0_i32 = arith.constant 0 : i32
    %c0_i32_0 = arith.constant 0 : i32
    %c0_i32_1 = arith.constant 0 : i32
    return %c0_i32, %c0_i32_0 : i32, i32
  }
  func.func @transform_2(%arg0: i32) -> (i32, i32) {
    %c0_i32 = arith.constant 0 : i32
    %c0_i32_0 = arith.constant 0 : i32
    %c0_i32_1 = arith.constant 0 : i32
    return %c0_i32, %c0_i32_0 : i32, i32
  }
  func.func @transform_3(%arg0: i32) -> (i32, i32) {
    %c0_i32 = arith.constant 0 : i32
    %c0_i32_0 = arith.constant 0 : i32
    %c0_i32_1 = arith.constant 0 : i32
    return %c0_i32, %c0_i32_0 : i32, i32
  }
  func.func @transform_4(%arg0: i32) -> (i32, i32) {
    %c0_i32 = arith.constant 0 : i32
    %c0_i32_0 = arith.constant 0 : i32
    %c0_i32_1 = arith.constant 0 : i32
    return %c0_i32, %c0_i32_0 : i32, i32
  }
  func.func @transform_5(%arg0: i32) -> (i32, i32) {
    %c0_i32 = arith.constant 0 : i32
    %c0_i32_0 = arith.constant 0 : i32
    %c0_i32_1 = arith.constant 0 : i32
    return %c0_i32, %c0_i32_0 : i32, i32
  }
  func.func @transform_6(%arg0: i32) -> (i32, i32) {
    %c0_i32 = arith.constant 0 : i32
    %c0_i32_0 = arith.constant 0 : i32
    %c0_i32_1 = arith.constant 0 : i32
    return %c0_i32, %c0_i32_0 : i32, i32
  }
  func.func @transform_7(%arg0: i32) -> (i32, i32) {
    %c0_i32 = arith.constant 0 : i32
    %c0_i32_0 = arith.constant 0 : i32
    %c0_i32_1 = arith.constant 0 : i32
    return %c0_i32, %c0_i32_0 : i32, i32
  }
  func.func @transform_8(%arg0: i32) -> (i32, i32) {
    %c0_i32 = arith.constant 0 : i32
    %c0_i32_0 = arith.constant 0 : i32
    %c0_i32_1 = arith.constant 0 : i32
    return %c0_i32, %c0_i32_0 : i32, i32
  }
  func.func @transform_9(%arg0: i32) -> (i32, i32) {
    %c0_i32 = arith.constant 0 : i32
    %c0_i32_0 = arith.constant 0 : i32
    %c0_i32_1 = arith.constant 0 : i32
    return %c0_i32, %c0_i32_0 : i32, i32
  }
  func.func @transform_10(%arg0: i32) -> (i32, i32) {
    %c0_i32 = arith.constant 0 : i32
    %c0_i32_0 = arith.constant 0 : i32
    %c0_i32_1 = arith.constant 0 : i32
    return %c0_i32, %c0_i32_0 : i32, i32
  }
  func.func @transform_11(%arg0: i32) -> (i32, i32) {
    %c0_i32 = arith.constant 0 : i32
    %c0_i32_0 = arith.constant 0 : i32
    %c0_i32_1 = arith.constant 0 : i32
    return %c0_i32, %c0_i32_0 : i32, i32
  }
  func.func @transform_12(%arg0: i32) -> (i32, i32) {
    %c0_i32 = arith.constant 0 : i32
    %c0_i32_0 = arith.constant 0 : i32
    %c0_i32_1 = arith.constant 0 : i32
    return %c0_i32, %c0_i32_0 : i32, i32
  }
  func.func @transform_13(%arg0: i32) -> (i32, i32) {
    %c0_i32 = arith.constant 0 : i32
    %c0_i32_0 = arith.constant 0 : i32
    return %arg0, %c0_i32 : i32, i32
  }
}

</mosaic_0001>

<llo_original>
// kernel: tpu_custom_call.1
$region0: #{tpu_custom_call.1}
  #allocation0 [shape = 'u32[]', space=smem, size = 0x4, offset = 0x4, fixed_abs, tag = 'smem constant byte address 0x4 - core index']
  #allocation1 [shape = 'u32[72,128]{1,0:T(1,128)}', space=vmem, size = 0x9000, scoped, tag = 'internal scratch']
  %s0 = inlined_call_operand.hbm [shape: f32[16,256], index: 0, kind: input, shape index: {}]
  %s1 = inlined_call_operand.hbm [shape: f32[256,256], index: 1, kind: input, shape index: {}]
  %s2 = inlined_call_operand.hbm [shape: f32[1,256], index: 2, kind: input, shape index: {}]
  %s3 = inlined_call_operand.hbm [shape: f32[256,128], index: 3, kind: input, shape index: {}]
  %s4 = inlined_call_operand.vmem [shape: f32[1,128], index: 4, kind: input, shape index: {}]
  %s5 = inlined_call_operand.vmem [shape: f32[1,128], index: 5, kind: input, shape index: {}]
  %s6 = inlined_call_operand.vmem [shape: f32[1,128], index: 6, kind: input, shape index: {}]
  %s7 = inlined_call_operand.hbm [shape: f32[128,256], index: 7, kind: input, shape index: {}]
  %s8 = inlined_call_operand.vmem [shape: f32[1,256], index: 8, kind: input, shape index: {}]
  %s9 = inlined_call_operand.hbm [shape: f32[256,128], index: 9, kind: input, shape index: {}]
  %s10 = inlined_call_operand.vmem [shape: f32[1,128], index: 10, kind: input, shape index: {}]
  %s11 = inlined_call_operand.vmem [shape: f32[1,128], index: 11, kind: input, shape index: {}]
  %s12 = inlined_call_operand.vmem [shape: f32[1,128], index: 12, kind: input, shape index: {}]
  %s13 = inlined_call_operand.hbm [shape: f32[16,128], index: 13, kind: output, shape index: {}]
  %s14 = sld [smem:[#allocation0]]
  $region86: #{tpu_custom_call.1} parent=0
    _
  %s16 = ssub.s32 1, %s14
  %s17 = scalar_select 0, %s16, %s14
  $region1: #{tpu_custom_call.1} parent=0
    #allocation2 [shape = 'u8[16384]{0}', space=vmem, size = 0x4000, scoped, tag = 'input window, operand 0, single buffered']
    #allocation3 [shape = 's32[1]{0}', space=sflag, size = 0x4, scoped, tag = 'scoped memory for tpu_custom_call.1']
    #allocation4 [shape = 's32[1]{0}', space=sflag, size = 0x4, scoped, tag = 'scoped memory for tpu_custom_call.1']
    #allocation5 [shape = 'u8[262144]{0}', space=vmem, size = 0x40000, scoped, tag = 'input window, operand 1, single buffered']
    #allocation6 [shape = 's32[1]{0}', space=sflag, size = 0x4, scoped, tag = 'scoped memory for tpu_custom_call.1']
    #allocation7 [shape = 'u8[1024]{0}', space=vmem, size = 0x400, scoped, tag = 'input window, operand 2, single buffered']
    #allocation8 [shape = 'u8[131072]{0}', space=vmem, size = 0x20000, scoped, tag = 'input window, operand 3, single buffered']
    #allocation9 [shape = 's32[1]{0}', space=sflag, size = 0x4, scoped, tag = 'scoped memory for tpu_custom_call.1']
    #allocation10 [shape = 'u8[131072]{0}', space=vmem, size = 0x20000, scoped, tag = 'input window, operand 7, single buffered']
    #allocation11 [shape = 'u8[131072]{0}', space=vmem, size = 0x20000, scoped, tag = 'input window, operand 9, single buffered']
    #allocation12 [shape = 's32[1]{0}', space=sflag, size = 0x4, scoped, tag = 'scoped memory for tpu_custom_call.1']
    #allocation13 [shape = 'u8[8192]{0}', space=vmem, size = 0x2000, scoped, tag = 'output window, operand 0, single buffered']
    %18 = vsyncpa [#allocation3], 0
    %19 = vsyncpa [#allocation6], 0
    %20 = vsyncpa [#allocation9], 0
    %21 = vsyncpa [#allocation12], 0
    %22 = vsyncpa [#allocation4], 0
    // Predicated region
    $region2: #{tpu_custom_call.1} parent=1 // pred_check
      _
    $region3: #{tpu_custom_call.1} parent=1 // pred_check_branch
      %24 = sbr.rel (0) target = $region5
    $region4: #{tpu_custom_call.1} parent=1 // pred_region
      %26 = vsyncadd [#allocation3], 0
      %s27 = sshll.u32 %s0, 4
      %s28 = int_to_ptr.hbm [resolvable:$true] %s27
      %s29 = sshll.u32 [#allocation2], 4
      %s30 = int_to_ptr.vmem [resolvable:$true] %s29
      %35 = dma.hbm_to_vmem [thread:$0]  %s28, 512, %s30, [#allocation3], 256, 256, 16
    $region5: #{tpu_custom_call.1} parent=1 // pred_fallthru
      _
    // Predicated region
    $region6: #{tpu_custom_call.1} parent=1 // pred_check
      _
    $region7: #{tpu_custom_call.1} parent=1 // pred_check_branch
      %37 = sbr.rel (0) target = $region9
    $region8: #{tpu_custom_call.1} parent=1 // pred_region
      %39 = vsyncadd [#allocation6], 0
      %s40 = sshll.u32 %s1, 4
      %s41 = int_to_ptr.hbm [resolvable:$true] %s40
      %s42 = sshll.u32 [#allocation5], 4
      %s43 = int_to_ptr.vmem [resolvable:$true] %s42
      %48 = dma.hbm_to_vmem [thread:$0]  %s41, 8192, %s43, [#allocation6], 256, 256, 16
    $region9: #{tpu_custom_call.1} parent=1 // pred_fallthru
      _
    // Predicated region
    $region10: #{tpu_custom_call.1} parent=1 // pred_check
      _
    $region11: #{tpu_custom_call.1} parent=1 // pred_check_branch
      %50 = sbr.rel (0) target = $region13
    $region12: #{tpu_custom_call.1} parent=1 // pred_region
      %52 = vsyncadd [#allocation6], 0
      %s54 = sshll.u32 %s2, 4
      %s55 = int_to_ptr.hbm [resolvable:$true] %s54
      %s56 = sshll.u32 [#allocation7], 4
      %s57 = int_to_ptr.vmem [resolvable:$true] %s56
      %59 = dma.hbm_to_vmem [thread:$0]  %s55, 32, %s57, [#allocation6]
    $region13: #{tpu_custom_call.1} parent=1 // pred_fallthru
      _
    // Predicated region
    $region14: #{tpu_custom_call.1} parent=1 // pred_check
      _
    $region15: #{tpu_custom_call.1} parent=1 // pred_check_branch
      %61 = sbr.rel (0) target = $region17
    $region16: #{tpu_custom_call.1} parent=1 // pred_region
      %63 = vsyncadd [#allocation9], 0
      %s64 = sshll.u32 %s3, 4
      %s65 = int_to_ptr.hbm [resolvable:$true] %s64
      %s66 = sshll.u32 [#allocation8], 4
      %s67 = int_to_ptr.vmem [resolvable:$true] %s66
      %72 = dma.hbm_to_vmem [thread:$0]  %s65, 4096, %s67, [#allocation9], 128, 128, 8
    $region17: #{tpu_custom_call.1} parent=1 // pred_fallthru
      _
    // Predicated region
    $region18: #{tpu_custom_call.1} parent=1 // pred_check
      _
    $region19: #{tpu_custom_call.1} parent=1 // pred_check_branch
      %74 = sbr.rel (0) target = $region21
    $region20: #{tpu_custom_call.1} parent=1 // pred_region
      _
    $region21: #{tpu_custom_call.1} parent=1 // pred_fallthru
      _
    // Predicated region
    $region22: #{tpu_custom_call.1} parent=1 // pred_check
      _
    $region23: #{tpu_custom_call.1} parent=1 // pred_check_branch
      %76 = sbr.rel (0) target = $region25
    $region24: #{tpu_custom_call.1} parent=1 // pred_region
      _
    $region25: #{tpu_custom_call.1} parent=1 // pred_fallthru
      _
    // Predicated region
    $region26: #{tpu_custom_call.1} parent=1 // pred_check
      _
    $region27: #{tpu_custom_call.1} parent=1 // pred_check_branch
      %78 = sbr.rel (0) target = $region29
    $region28: #{tpu_custom_call.1} parent=1 // pred_region
      _
    $region29: #{tpu_custom_call.1} parent=1 // pred_fallthru
      _
    // Predicated region
    $region30: #{tpu_custom_call.1} parent=1 // pred_check
      _
    $region31: #{tpu_custom_call.1} parent=1 // pred_check_branch
      %80 = sbr.rel (0) target = $region33
    $region32: #{tpu_custom_call.1} parent=1 // pred_region
      %82 = vsyncadd [#allocation9], 0
      %s83 = sshll.u32 %s7, 4
      %s84 = int_to_ptr.hbm [resolvable:$true] %s83
      %s85 = sshll.u32 [#allocation10], 4
      %s86 = int_to_ptr.vmem [resolvable:$true] %s85
      %91 = dma.hbm_to_vmem [thread:$0]  %s84, 4096, %s86, [#allocation9], 256, 256, 16
    $region33: #{tpu_custom_call.1} parent=1 // pred_fallthru
      _
    // Predicated region
    $region34: #{tpu_custom_call.1} parent=1 // pred_check
      _
    $region35: #{tpu_custom_call.1} parent=1 // pred_check_branch
      %93 = sbr.rel (0) target = $region37
    $region36: #{tpu_custom_call.1} parent=1 // pred_region
      _
    $region37: #{tpu_custom_call.1} parent=1 // pred_fallthru
      _
    // Predicated region
    $region38: #{tpu_custom_call.1} parent=1 // pred_check
      _
    $region39: #{tpu_custom_call.1} parent=1 // pred_check_branch
      %95 = sbr.rel (0) target = $region41
    $region40: #{tpu_custom_call.1} parent=1 // pred_region
      %97 = vsyncadd [#allocation12], 0
      %s98 = sshll.u32 %s9, 4
      %s99 = int_to_ptr.hbm [resolvable:$true] %s98
      %s100 = sshll.u32 [#allocation11], 4
      %s101 = int_to_ptr.vmem [resolvable:$true] %s100
      %106 = dma.hbm_to_vmem [thread:$0]  %s99, 4096, %s101, [#allocation12], 128, 128, 8
    $region41: #{tpu_custom_call.1} parent=1 // pred_fallthru
      _
    // Predicated region
    $region42: #{tpu_custom_call.1} parent=1 // pred_check
      _
    $region43: #{tpu_custom_call.1} parent=1 // pred_check_branch
      %108 = sbr.rel (0) target = $region45
    $region44: #{tpu_custom_call.1} parent=1 // pred_region
      _
    $region45: #{tpu_custom_call.1} parent=1 // pred_fallthru
      _
    // Predicated region
    $region46: #{tpu_custom_call.1} parent=1 // pred_check
      _
    $region47: #{tpu_custom_call.1} parent=1 // pred_check_branch
      %110 = sbr.rel (0) target = $region49
    $region48: #{tpu_custom_call.1} parent=1 // pred_region
      _
    $region49: #{tpu_custom_call.1} parent=1 // pred_fallthru
      _
    // Predicated region
    $region50: #{tpu_custom_call.1} parent=1 // pred_check
      _
    $region51: #{tpu_custom_call.1} parent=1 // pred_check_branch
      %112 = sbr.rel (0) target = $region53
    $region52: #{tpu_custom_call.1} parent=1 // pred_region
      _
    $region53: #{tpu_custom_call.1} parent=1 // pred_fallthru
      _
    // Predicated region
    $region54: #{tpu_custom_call.1} parent=1 // pred_check
      _
    $region55: #{tpu_custom_call.1} parent=1 // pred_check_branch
      %114 = sbr.rel (0) target = $region57
    $region56: #{tpu_custom_call.1} parent=1 // pred_region
      %116 = dma.done [#allocation3], 512
    $region57: #{tpu_custom_call.1} parent=1 // pred_fallthru
      _
    // Predicated region
    $region58: #{tpu_custom_call.1} parent=1 // pred_check
      _
    $region59: #{tpu_custom_call.1} parent=1 // pred_check_branch
      %118 = sbr.rel (0) target = $region61
    $region60: #{tpu_custom_call.1} parent=1 // pred_region
      %120 = dma.done [#allocation6], 8192
    $region61: #{tpu_custom_call.1} parent=1 // pred_fallthru
      _
    // Predicated region
    $region62: #{tpu_custom_call.1} parent=1 // pred_check
      _
    $region63: #{tpu_custom_call.1} parent=1 // pred_check_branch
      %122 = sbr.rel (0) target = $region65
    $region64: #{tpu_custom_call.1} parent=1 // pred_region
      %124 = dma.done [#allocation6], 32
    $region65: #{tpu_custom_call.1} parent=1 // pred_fallthru
      _
    // Predicated region
    $region66: #{tpu_custom_call.1} parent=1 // pred_check
      _
    $region67: #{tpu_custom_call.1} parent=1 // pred_check_branch
      %126 = sbr.rel (0) target = $region69
    $region68: #{tpu_custom_call.1} parent=1 // pred_region
      %128 = dma.done [#allocation9], 4096
    $region69: #{tpu_custom_call.1} parent=1 // pred_fallthru
      _
    // Predicated region
    $region70: #{tpu_custom_call.1} parent=1 // pred_check
      _
    $region71: #{tpu_custom_call.1} parent=1 // pred_check_branch
      %130 = sbr.rel (0) target = $region73
    $region72: #{tpu_custom_call.1} parent=1 // pred_region
      %132 = dma.done [#allocation9], 4096
    $region73: #{tpu_custom_call.1} parent=1 // pred_fallthru
      _
    // Predicated region
    $region74: #{tpu_custom_call.1} parent=1 // pred_check
      _
    $region75: #{tpu_custom_call.1} parent=1 // pred_check_branch
      %134 = sbr.rel (0) target = $region77
    $region76: #{tpu_custom_call.1} parent=1 // pred_region
      %136 = dma.done [#allocation12], 4096
    $region77: #{tpu_custom_call.1} parent=1 // pred_fallthru
      _
    %v137 = vld [vmem:[#allocation2] sm:$0xff]
    %v138 = vld [vmem:[#allocation2 + $0x8] sm:$0xff]
    %v139 = vld [vmem:[#allocation2 + $0x10] sm:$0xff]
    %v140 = vld [vmem:[#allocation2 + $0x18] sm:$0xff]
    %v141 = vld [vmem:[#allocation5] sm:$0xff]
    %v142 = vld [vmem:[#allocation5 + $0x8] sm:$0xff]
    %v143 = vld [vmem:[#allocation5 + $0x10] sm:$0xff]
    %v144 = vld [vmem:[#allocation5 + $0x18] sm:$0xff]
    %v145 = vld [vmem:[#allocation5 + $0x20] sm:$0xff]
    %v146 = vld [vmem:[#allocation5 + $0x28] sm:$0xff]
    %v147 = vld [vmem:[#allocation5 + $0x30] sm:$0xff]
    %v148 = vld [vmem:[#allocation5 + $0x38] sm:$0xff]
    %v149 = vld [vmem:[#allocation5 + $0x40] sm:$0xff]
    %v150 = vld [vmem:[#allocation5 + $0x48] sm:$0xff]
    %v151 = vld [vmem:[#allocation5 + $0x50] sm:$0xff]
    %v152 = vld [vmem:[#allocation5 + $0x58] sm:$0xff]
    %v153 = vld [vmem:[#allocation5 + $0x60] sm:$0xff]
    %v154 = vld [vmem:[#allocation5 + $0x68] sm:$0xff]
    %v155 = vld [vmem:[#allocation5 + $0x70] sm:$0xff]
    %v156 = vld [vmem:[#allocation5 + $0x78] sm:$0xff]
    %v157 = vld [vmem:[#allocation5 + $0x80] sm:$0xff]
    %v158 = vld [vmem:[#allocation5 + $0x88] sm:$0xff]
    %v159 = vld [vmem:[#allocation5 + $0x90] sm:$0xff]
    %v160 = vld [vmem:[#allocation5 + $0x98] sm:$0xff]
    %v161 = vld [vmem:[#allocation5 + $0xa0] sm:$0xff]
    %v162 = vld [vmem:[#allocation5 + $0xa8] sm:$0xff]
    %v163 = vld [vmem:[#allocation5 + $0xb0] sm:$0xff]
    %v164 = vld [vmem:[#allocation5 + $0xb8] sm:$0xff]
    %v165 = vld [vmem:[#allocation5 + $0xc0] sm:$0xff]
    %v166 = vld [vmem:[#allocation5 + $0xc8] sm:$0xff]
    %v167 = vld [vmem:[#allocation5 + $0xd0] sm:$0xff]
    %v168 = vld [vmem:[#allocation5 + $0xd8] sm:$0xff]
    %v169 = vld [vmem:[#allocation5 + $0xe0] sm:$0xff]
    %v170 = vld [vmem:[#allocation5 + $0xe8] sm:$0xff]
    %v171 = vld [vmem:[#allocation5 + $0xf0] sm:$0xff]
    %v172 = vld [vmem:[#allocation5 + $0xf8] sm:$0xff]
    %v173 = vld [vmem:[#allocation5 + $0x100] sm:$0xff]
    %v174 = vld [vmem:[#allocation5 + $0x108] sm:$0xff]
    %v175 = vld [vmem:[#allocation5 + $0x110] sm:$0xff]
    %v176 = vld [vmem:[#allocation5 + $0x118] sm:$0xff]
    %v177 = vld [vmem:[#allocation5 + $0x120] sm:$0xff]
    %v178 = vld [vmem:[#allocation5 + $0x128] sm:$0xff]
    %v179 = vld [vmem:[#allocation5 + $0x130] sm:$0xff]
    %v180 = vld [vmem:[#allocation5 + $0x138] sm:$0xff]
    %v181 = vld [vmem:[#allocation5 + $0x140] sm:$0xff]
    %v182 = vld [vmem:[#allocation5 + $0x148] sm:$0xff]
    %v183 = vld [vmem:[#allocation5 + $0x150] sm:$0xff]
    %v184 = vld [vmem:[#allocation5 + $0x158] sm:$0xff]
    %v185 = vld [vmem:[#allocation5 + $0x160] sm:$0xff]
    %v186 = vld [vmem:[#allocation5 + $0x168] sm:$0xff]
    %v187 = vld [vmem:[#allocation5 + $0x170] sm:$0xff]
    %v188 = vld [vmem:[#allocation5 + $0x178] sm:$0xff]
    %v189 = vld [vmem:[#allocation5 + $0x180] sm:$0xff]
    %v190 = vld [vmem:[#allocation5 + $0x188] sm:$0xff]
    %v191 = vld [vmem:[#allocation5 + $0x190] sm:$0xff]
    %v192 = vld [vmem:[#allocation5 + $0x198] sm:$0xff]
    %v193 = vld [vmem:[#allocation5 + $0x1a0] sm:$0xff]
    %v194 = vld [vmem:[#allocation5 + $0x1a8] sm:$0xff]
    %v195 = vld [vmem:[#allocation5 + $0x1b0] sm:$0xff]
    %v196 = vld [vmem:[#allocation5 + $0x1b8] sm:$0xff]
    %v197 = vld [vmem:[#allocation5 + $0x1c0] sm:$0xff]
    %v198 = vld [vmem:[#allocation5 + $0x1c8] sm:$0xff]
    %v199 = vld [vmem:[#allocation5 + $0x1d0] sm:$0xff]
    %v200 = vld [vmem:[#allocation5 + $0x1d8] sm:$0xff]
    %v201 = vld [vmem:[#allocation5 + $0x1e0] sm:$0xff]
    %v202 = vld [vmem:[#allocation5 + $0x1e8] sm:$0xff]
    %v203 = vld [vmem:[#allocation5 + $0x1f0] sm:$0xff]
    %v204 = vld [vmem:[#allocation5 + $0x1f8] sm:$0xff]
    %v205 = vld [vmem:[#allocation7] sm:$0x3]
    %v207 = vperm.slane %v205, 0
    %v208 = vperm.slane %v205, 1
    %211 = vmatpush.msra.mxu0 %v171
    %212 = vmatpush.msra.mxu0 %v169
    %213 = vmatpush.msra.mxu0 %v167
    %214 = vmatpush.msra.mxu0 %v165
    %215 = vmatpush.msra.mxu0 %v163
    %216 = vmatpush.msra.mxu0 %v161
    %217 = vmatpush.msra.mxu0 %v159
    %218 = vmatpush.msra.mxu0 %v157
    %219 = vmatpush.msra.mxu0 %v155
    %220 = vmatpush.msra.mxu0 %v153
    %221 = vmatpush.msra.mxu0 %v151
    %222 = vmatpush.msra.mxu0 %v149
    %223 = vmatpush.msra.mxu0 %v147
    %224 = vmatpush.msra.mxu0 %v145
    %225 = vmatpush.msra.mxu0 %v143
    %226 = vmatpush.msra.mxu0 %v141
    %227 = vmatmul.f32.gmra.mxu0 %v137
    %v228 = vpop.f32.mrf.mxu0
    %v229 = vadd.f32 %v207, %v228
    %230 = vmatmul.f32.gmra.mxu0 %v139
    %v231 = vpop.f32.mrf.mxu0
    %v232 = vadd.f32 %v207, %v231
    %233 = vdwg.mxu0
    %234 = vmatpush.msra.mxu0 %v203
    %235 = vmatpush.msra.mxu0 %v201
    %236 = vmatpush.msra.mxu0 %v199
    %237 = vmatpush.msra.mxu0 %v197
    %238 = vmatpush.msra.mxu0 %v195
    %239 = vmatpush.msra.mxu0 %v193
    %240 = vmatpush.msra.mxu0 %v191
    %241 = vmatpush.msra.mxu0 %v189
    %242 = vmatpush.msra.mxu0 %v187
    %243 = vmatpush.msra.mxu0 %v185
    %244 = vmatpush.msra.mxu0 %v183
    %245 = vmatpush.msra.mxu0 %v181
    %246 = vmatpush.msra.mxu0 %v179
    %247 = vmatpush.msra.mxu0 %v177
    %248 = vmatpush.msra.mxu0 %v175
    %249 = vmatpush.msra.mxu0 %v173
    %250 = vmatmul.f32.gmra.mxu0 %v138
    %v251 = vpop.f32.mrf.mxu0
    %v252 = vadd.f32 %v229, %v251
    %253 = vmatmul.f32.gmra.mxu0 %v140
    %v254 = vpop.f32.mrf.mxu0
    %v255 = vadd.f32 %v232, %v254
    %256 = vdwg.mxu0
    %257 = vmatpush.msra.mxu0 %v172
    %258 = vmatpush.msra.mxu0 %v170
    %259 = vmatpush.msra.mxu0 %v168
    %260 = vmatpush.msra.mxu0 %v166
    %261 = vmatpush.msra.mxu0 %v164
    %262 = vmatpush.msra.mxu0 %v162
    %263 = vmatpush.msra.mxu0 %v160
    %264 = vmatpush.msra.mxu0 %v158
    %265 = vmatpush.msra.mxu0 %v156
    %266 = vmatpush.msra.mxu0 %v154
    %267 = vmatpush.msra.mxu0 %v152
    %268 = vmatpush.msra.mxu0 %v150
    %269 = vmatpush.msra.mxu0 %v148
    %270 = vmatpush.msra.mxu0 %v146
    %271 = vmatpush.msra.mxu0 %v144
    %272 = vmatpush.msra.mxu0 %v142
    %273 = vmatmul.f32.gmra.mxu0 %v137
    %v274 = vpop.f32.mrf.mxu0
    %v275 = vadd.f32 %v208, %v274
    %276 = vmatmul.f32.gmra.mxu0 %v139
    %v277 = vpop.f32.mrf.mxu0
    %v278 = vadd.f32 %v208, %v277
    %279 = vdwg.mxu0
    %280 = vmatpush.msra.mxu0 %v204
    %281 = vmatpush.msra.mxu0 %v202
    %282 = vmatpush.msra.mxu0 %v200
    %283 = vmatpush.msra.mxu0 %v198
    %284 = vmatpush.msra.mxu0 %v196
    %285 = vmatpush.msra.mxu0 %v194
    %286 = vmatpush.msra.mxu0 %v192
    %287 = vmatpush.msra.mxu0 %v190
    %288 = vmatpush.msra.mxu0 %v188
    %289 = vmatpush.msra.mxu0 %v186
    %290 = vmatpush.msra.mxu0 %v184
    %291 = vmatpush.msra.mxu0 %v182
    %292 = vmatpush.msra.mxu0 %v180
    %293 = vmatpush.msra.mxu0 %v178
    %294 = vmatpush.msra.mxu0 %v176
    %295 = vmatpush.msra.mxu0 %v174
    %296 = vmatmul.f32.gmra.mxu0 %v138
    %v297 = vpop.f32.mrf.mxu0
    %v298 = vadd.f32 %v275, %v297
    %299 = vmatmul.f32.gmra.mxu0 %v140
    %v300 = vpop.f32.mrf.mxu0
    %v301 = vadd.f32 %v278, %v300
    %302 = vdwg.mxu0
    %v303 = vmax.f32 %v252, 0.0
    %v304 = vmax.f32 %v298, 0.0
    %v305 = vmax.f32 %v255, 0.0
    %v306 = vmax.f32 %v301, 0.0
    %v307 = vld [vmem:[#allocation8] sm:$0xff]
    %v308 = vld [vmem:[#allocation8 + $0x8] sm:$0xff]
    %v309 = vld [vmem:[#allocation8 + $0x10] sm:$0xff]
    %v310 = vld [vmem:[#allocation8 + $0x18] sm:$0xff]
    %v311 = vld [vmem:[#allocation8 + $0x20] sm:$0xff]
    %v312 = vld [vmem:[#allocation8 + $0x28] sm:$0xff]
    %v313 = vld [vmem:[#allocation8 + $0x30] sm:$0xff]
    %v314 = vld [vmem:[#allocation8 + $0x38] sm:$0xff]
    %v315 = vld [vmem:[#allocation8 + $0x40] sm:$0xff]
    %v316 = vld [vmem:[#allocation8 + $0x48] sm:$0xff]
    %v317 = vld [vmem:[#allocation8 + $0x50] sm:$0xff]
    %v318 = vld [vmem:[#allocation8 + $0x58] sm:$0xff]
    %v319 = vld [vmem:[#allocation8 + $0x60] sm:$0xff]
    %v320 = vld [vmem:[#allocation8 + $0x68] sm:$0xff]
    %v321 = vld [vmem:[#allocation8 + $0x70] sm:$0xff]
    %v322 = vld [vmem:[#allocation8 + $0x78] sm:$0xff]
    %v323 = vld [vmem:[#allocation8 + $0x80] sm:$0xff]
    %v324 = vld [vmem:[#allocation8 + $0x88] sm:$0xff]
    %v325 = vld [vmem:[#allocation8 + $0x90] sm:$0xff]
    %v326 = vld [vmem:[#allocation8 + $0x98] sm:$0xff]
    %v327 = vld [vmem:[#allocation8 + $0xa0] sm:$0xff]
    %v328 = vld [vmem:[#allocation8 + $0xa8] sm:$0xff]
    %v329 = vld [vmem:[#allocation8 + $0xb0] sm:$0xff]
    %v330 = vld [vmem:[#allocation8 + $0xb8] sm:$0xff]
    %v331 = vld [vmem:[#allocation8 + $0xc0] sm:$0xff]
    %v332 = vld [vmem:[#allocation8 + $0xc8] sm:$0xff]
    %v333 = vld [vmem:[#allocation8 + $0xd0] sm:$0xff]
    %v334 = vld [vmem:[#allocation8 + $0xd8] sm:$0xff]
    %v335 = vld [vmem:[#allocation8 + $0xe0] sm:$0xff]
    %v336 = vld [vmem:[#allocation8 + $0xe8] sm:$0xff]
    %v337 = vld [vmem:[#allocation8 + $0xf0] sm:$0xff]
    %v338 = vld [vmem:[#allocation8 + $0xf8] sm:$0xff]
    %v339 = vld [vmem:[%s4] sm:$0x1]
    %v341 = vperm.slane %v339, 0
    %343 = vmatpush.msra.mxu0 %v322
    %344 = vmatpush.msra.mxu0 %v321
    %345 = vmatpush.msra.mxu0 %v320
    %346 = vmatpush.msra.mxu0 %v319
    %347 = vmatpush.msra.mxu0 %v318
    %348 = vmatpush.msra.mxu0 %v317
    %349 = vmatpush.msra.mxu0 %v316
    %350 = vmatpush.msra.mxu0 %v315
    %351 = vmatpush.msra.mxu0 %v314
    %352 = vmatpush.msra.mxu0 %v313
    %353 = vmatpush.msra.mxu0 %v312
    %354 = vmatpush.msra.mxu0 %v311
    %355 = vmatpush.msra.mxu0 %v310
    %356 = vmatpush.msra.mxu0 %v309
    %357 = vmatpush.msra.mxu0 %v308
    %358 = vmatpush.msra.mxu0 %v307
    %359 = vmatmul.f32.gmra.mxu0 %v303
    %v360 = vpop.f32.mrf.mxu0
    %v361 = vadd.f32 %v341, %v360
    %362 = vmatmul.f32.gmra.mxu0 %v305
    %v363 = vpop.f32.mrf.mxu0
    %v364 = vadd.f32 %v341, %v363
    %365 = vdwg.mxu0
    %366 = vmatpush.msra.mxu0 %v338
    %367 = vmatpush.msra.mxu0 %v337
    %368 = vmatpush.msra.mxu0 %v336
    %369 = vmatpush.msra.mxu0 %v335
    %370 = vmatpush.msra.mxu0 %v334
    %371 = vmatpush.msra.mxu0 %v333
    %372 = vmatpush.msra.mxu0 %v332
    %373 = vmatpush.msra.mxu0 %v331
    %374 = vmatpush.msra.mxu0 %v330
    %375 = vmatpush.msra.mxu0 %v329
    %376 = vmatpush.msra.mxu0 %v328
    %377 = vmatpush.msra.mxu0 %v327
    %378 = vmatpush.msra.mxu0 %v326
    %379 = vmatpush.msra.mxu0 %v325
    %380 = vmatpush.msra.mxu0 %v324
    %381 = vmatpush.msra.mxu0 %v323
    %382 = vmatmul.f32.gmra.mxu0 %v304
    %v383 = vpop.f32.mrf.mxu0
    %v384 = vadd.f32 %v361, %v383
    %385 = vmatmul.f32.gmra.mxu0 %v306
    %v386 = vpop.f32.mrf.mxu0
    %v387 = vadd.f32 %v364, %v386
    %388 = vdwg.mxu0
    %389 = vadd.xlane.f32.xlu0 %v384
    %v390 = vpop.xlane.xlu0 %389
    %391 = vadd.xlane.f32.xlu0 %v387
    %v392 = vpop.xlane.xlu0 %391
    %v393 = vrcp.pop 128.0
    %v394 = vmul.f32 128.0, %v393
    %v395 = vsub.f32 1.0, %v394
    %v396 = vmul.f32 %v393, %v395
    %v397 = vadd.f32 %v393, %v396
    %vm398 = vweird.f32 %v393
    %v399 = vsel %vm398, %v393, %v397
    %v400 = vmul.f32 %v390, %v399
    %v401 = vmul.f32 %v392, %v399
    %v402 = vsub.f32 %v384, %v400
    %v403 = vsub.f32 %v387, %v401
    %v404 = vmul.f32 %v402, %v402
    %v405 = vmul.f32 %v403, %v403
    %406 = vadd.xlane.f32.xlu0 %v404
    %v407 = vpop.xlane.xlu0 %406
    %408 = vadd.xlane.f32.xlu0 %v405
    %v409 = vpop.xlane.xlu0 %408
    %v410 = vmul.f32 %v407, %v399
    %v411 = vmul.f32 %v409, %v399
    %v412 = vadd.f32 %v410, 1e-05
    %v413 = vadd.f32 %v411, 1e-05
    %v414 = vrsqrt.pop %v412
    %v415 = vmul.f32 %v414, %v412
    %v416 = vmul.f32 %v415, %v414
    %v417 = vmul.f32 0.5, %v416
    %v418 = vsub.f32 1.5, %v417
    %v419 = vmul.f32 %v414, %v418
    %vm420 = vweird.f32 %v412
    %vm421 = vweird.f32 %v414
    %vm422 = vmor %vm420, %vm421
    %v423 = vsel %vm422, %v414, %v419
    %v424 = vrsqrt.pop %v413
    %v425 = vmul.f32 %v424, %v413
    %v426 = vmul.f32 %v425, %v424
    %v427 = vmul.f32 0.5, %v426
    %v428 = vsub.f32 1.5, %v427
    %v429 = vmul.f32 %v424, %v428
    %vm430 = vweird.f32 %v413
    %vm431 = vweird.f32 %v424
    %vm432 = vmor %vm430, %vm431
    %v433 = vsel %vm432, %v424, %v429
    %v434 = vmul.f32 %v402, %v423
    %v435 = vmul.f32 %v403, %v433
    %v436 = vld [vmem:[%s5] sm:$0x1]
    %v438 = vperm.slane %v436, 0
    %v440 = vmul.f32 %v434, %v438
    %v441 = vmul.f32 %v435, %v438
    %v442 = vld [vmem:[%s6] sm:$0x1]
    %v444 = vperm.slane %v442, 0
    %v446 = vadd.f32 %v440, %v444
    %v447 = vadd.f32 %v441, %v444
    %v448 = vld [vmem:[#allocation10] sm:$0xff]
    %v449 = vld [vmem:[#allocation10 + $0x8] sm:$0xff]
    %v450 = vld [vmem:[#allocation10 + $0x10] sm:$0xff]
    %v451 = vld [vmem:[#allocation10 + $0x18] sm:$0xff]
    %v452 = vld [vmem:[#allocation10 + $0x20] sm:$0xff]
    %v453 = vld [vmem:[#allocation10 + $0x28] sm:$0xff]
    %v454 = vld [vmem:[#allocation10 + $0x30] sm:$0xff]
    %v455 = vld [vmem:[#allocation10 + $0x38] sm:$0xff]
    %v456 = vld [vmem:[#allocation10 + $0x40] sm:$0xff]
    %v457 = vld [vmem:[#allocation10 + $0x48] sm:$0xff]
    %v458 = vld [vmem:[#allocation10 + $0x50] sm:$0xff]
    %v459 = vld [vmem:[#allocation10 + $0x58] sm:$0xff]
    %v460 = vld [vmem:[#allocation10 + $0x60] sm:$0xff]
    %v461 = vld [vmem:[#allocation10 + $0x68] sm:$0xff]
    %v462 = vld [vmem:[#allocation10 + $0x70] sm:$0xff]
    %v463 = vld [vmem:[#allocation10 + $0x78] sm:$0xff]
    %v464 = vld [vmem:[#allocation10 + $0x80] sm:$0xff]
    %v465 = vld [vmem:[#allocation10 + $0x88] sm:$0xff]
    %v466 = vld [vmem:[#allocation10 + $0x90] sm:$0xff]
    %v467 = vld [vmem:[#allocation10 + $0x98] sm:$0xff]
    %v468 = vld [vmem:[#allocation10 + $0xa0] sm:$0xff]
    %v469 = vld [vmem:[#allocation10 + $0xa8] sm:$0xff]
    %v470 = vld [vmem:[#allocation10 + $0xb0] sm:$0xff]
    %v471 = vld [vmem:[#allocation10 + $0xb8] sm:$0xff]
    %v472 = vld [vmem:[#allocation10 + $0xc0] sm:$0xff]
    %v473 = vld [vmem:[#allocation10 + $0xc8] sm:$0xff]
    %v474 = vld [vmem:[#allocation10 + $0xd0] sm:$0xff]
    %v475 = vld [vmem:[#allocation10 + $0xd8] sm:$0xff]
    %v476 = vld [vmem:[#allocation10 + $0xe0] sm:$0xff]
    %v477 = vld [vmem:[#allocation10 + $0xe8] sm:$0xff]
    %v478 = vld [vmem:[#allocation10 + $0xf0] sm:$0xff]
    %v479 = vld [vmem:[#allocation10 + $0xf8] sm:$0xff]
    %v480 = vld [vmem:[%s8] sm:$0x3]
    %v482 = vperm.slane %v480, 0
    %v483 = vperm.slane %v480, 1
    %486 = vmatpush.msra.mxu0 %v478
    %487 = vmatpush.msra.mxu0 %v476
    %488 = vmatpush.msra.mxu0 %v474
    %489 = vmatpush.msra.mxu0 %v472
    %490 = vmatpush.msra.mxu0 %v470
    %491 = vmatpush.msra.mxu0 %v468
    %492 = vmatpush.msra.mxu0 %v466
    %493 = vmatpush.msra.mxu0 %v464
    %494 = vmatpush.msra.mxu0 %v462
    %495 = vmatpush.msra.mxu0 %v460
    %496 = vmatpush.msra.mxu0 %v458
    %497 = vmatpush.msra.mxu0 %v456
    %498 = vmatpush.msra.mxu0 %v454
    %499 = vmatpush.msra.mxu0 %v452
    %500 = vmatpush.msra.mxu0 %v450
    %501 = vmatpush.msra.mxu0 %v448
    %502 = vmatmul.f32.gmra.mxu0 %v446
    %v503 = vpop.f32.mrf.mxu0
    %v504 = vadd.f32 %v482, %v503
    %505 = vmatmul.f32.gmra.mxu0 %v447
    %v506 = vpop.f32.mrf.mxu0
    %v507 = vadd.f32 %v482, %v506
    %508 = vdwg.mxu0
    %509 = vmatpush.msra.mxu0 %v479
    %510 = vmatpush.msra.mxu0 %v477
    %511 = vmatpush.msra.mxu0 %v475
    %512 = vmatpush.msra.mxu0 %v473
    %513 = vmatpush.msra.mxu0 %v471
    %514 = vmatpush.msra.mxu0 %v469
    %515 = vmatpush.msra.mxu0 %v467
    %516 = vmatpush.msra.mxu0 %v465
    %517 = vmatpush.msra.mxu0 %v463
    %518 = vmatpush.msra.mxu0 %v461
    %519 = vmatpush.msra.mxu0 %v459
    %520 = vmatpush.msra.mxu0 %v457
    %521 = vmatpush.msra.mxu0 %v455
    %522 = vmatpush.msra.mxu0 %v453
    %523 = vmatpush.msra.mxu0 %v451
    %524 = vmatpush.msra.mxu0 %v449
    %525 = vmatmul.f32.gmra.mxu0 %v446
    %v526 = vpop.f32.mrf.mxu0
    %v527 = vadd.f32 %v483, %v526
    %528 = vmatmul.f32.gmra.mxu0 %v447
    %v529 = vpop.f32.mrf.mxu0
    %v530 = vadd.f32 %v483, %v529
    %531 = vdwg.mxu0
    %v532 = vmax.f32 %v504, 0.0
    %v533 = vmax.f32 %v527, 0.0
    %v534 = vmax.f32 %v507, 0.0
    %v535 = vmax.f32 %v530, 0.0
    %v536 = vld [vmem:[#allocation11] sm:$0xff]
    %v537 = vld [vmem:[#allocation11 + $0x8] sm:$0xff]
    %v538 = vld [vmem:[#allocation11 + $0x10] sm:$0xff]
    %v539 = vld [vmem:[#allocation11 + $0x18] sm:$0xff]
    %v540 = vld [vmem:[#allocation11 + $0x20] sm:$0xff]
    %v541 = vld [vmem:[#allocation11 + $0x28] sm:$0xff]
    %v542 = vld [vmem:[#allocation11 + $0x30] sm:$0xff]
    %v543 = vld [vmem:[#allocation11 + $0x38] sm:$0xff]
    %v544 = vld [vmem:[#allocation11 + $0x40] sm:$0xff]
    %v545 = vld [vmem:[#allocation11 + $0x48] sm:$0xff]
    %v546 = vld [vmem:[#allocation11 + $0x50] sm:$0xff]
    %v547 = vld [vmem:[#allocation11 + $0x58] sm:$0xff]
    %v548 = vld [vmem:[#allocation11 + $0x60] sm:$0xff]
    %v549 = vld [vmem:[#allocation11 + $0x68] sm:$0xff]
    %v550 = vld [vmem:[#allocation11 + $0x70] sm:$0xff]
    %v551 = vld [vmem:[#allocation11 + $0x78] sm:$0xff]
    %v552 = vld [vmem:[#allocation11 + $0x80] sm:$0xff]
    %v553 = vld [vmem:[#allocation11 + $0x88] sm:$0xff]
    %v554 = vld [vmem:[#allocation11 + $0x90] sm:$0xff]
    %v555 = vld [vmem:[#allocation11 + $0x98] sm:$0xff]
    %v556 = vld [vmem:[#allocation11 + $0xa0] sm:$0xff]
    %v557 = vld [vmem:[#allocation11 + $0xa8] sm:$0xff]
    %v558 = vld [vmem:[#allocation11 + $0xb0] sm:$0xff]
    %v559 = vld [vmem:[#allocation11 + $0xb8] sm:$0xff]
    %v560 = vld [vmem:[#allocation11 + $0xc0] sm:$0xff]
    %v561 = vld [vmem:[#allocation11 + $0xc8] sm:$0xff]
    %v562 = vld [vmem:[#allocation11 + $0xd0] sm:$0xff]
    %v563 = vld [vmem:[#allocation11 + $0xd8] sm:$0xff]
    %v564 = vld [vmem:[#allocation11 + $0xe0] sm:$0xff]
    %v565 = vld [vmem:[#allocation11 + $0xe8] sm:$0xff]
    %v566 = vld [vmem:[#allocation11 + $0xf0] sm:$0xff]
    %v567 = vld [vmem:[#allocation11 + $0xf8] sm:$0xff]
    %v568 = vld [vmem:[%s10] sm:$0x1]
    %v570 = vperm.slane %v568, 0
    %572 = vmatpush.msra.mxu0 %v551
    %573 = vmatpush.msra.mxu0 %v550
    %574 = vmatpush.msra.mxu0 %v549
    %575 = vmatpush.msra.mxu0 %v548
    %576 = vmatpush.msra.mxu0 %v547
    %577 = vmatpush.msra.mxu0 %v546
    %578 = vmatpush.msra.mxu0 %v545
    %579 = vmatpush.msra.mxu0 %v544
    %580 = vmatpush.msra.mxu0 %v543
    %581 = vmatpush.msra.mxu0 %v542
    %582 = vmatpush.msra.mxu0 %v541
    %583 = vmatpush.msra.mxu0 %v540
    %584 = vmatpush.msra.mxu0 %v539
    %585 = vmatpush.msra.mxu0 %v538
    %586 = vmatpush.msra.mxu0 %v537
    %587 = vmatpush.msra.mxu0 %v536
    %588 = vmatmul.f32.gmra.mxu0 %v532
    %v589 = vpop.f32.mrf.mxu0
    %v590 = vadd.f32 %v570, %v589
    %591 = vmatmul.f32.gmra.mxu0 %v534
    %v592 = vpop.f32.mrf.mxu0
    %v593 = vadd.f32 %v570, %v592
    %594 = vdwg.mxu0
    %595 = vmatpush.msra.mxu0 %v567
    %596 = vmatpush.msra.mxu0 %v566
    %597 = vmatpush.msra.mxu0 %v565
    %598 = vmatpush.msra.mxu0 %v564
    %599 = vmatpush.msra.mxu0 %v563
    %600 = vmatpush.msra.mxu0 %v562
    %601 = vmatpush.msra.mxu0 %v561
    %602 = vmatpush.msra.mxu0 %v560
    %603 = vmatpush.msra.mxu0 %v559
    %604 = vmatpush.msra.mxu0 %v558
    %605 = vmatpush.msra.mxu0 %v557
    %606 = vmatpush.msra.mxu0 %v556
    %607 = vmatpush.msra.mxu0 %v555
    %608 = vmatpush.msra.mxu0 %v554
    %609 = vmatpush.msra.mxu0 %v553
    %610 = vmatpush.msra.mxu0 %v552
    %611 = vmatmul.f32.gmra.mxu0 %v533
    %v612 = vpop.f32.mrf.mxu0
    %v613 = vadd.f32 %v590, %v612
    %614 = vmatmul.f32.gmra.mxu0 %v535
    %v615 = vpop.f32.mrf.mxu0
    %v616 = vadd.f32 %v593, %v615
    %617 = vdwg.mxu0
    %v618 = vadd.f32 %v613, %v446
    %v619 = vadd.f32 %v616, %v447
    %620 = vadd.xlane.f32.xlu0 %v618
    %v621 = vpop.xlane.xlu0 %620
    %622 = vadd.xlane.f32.xlu0 %v619
    %v623 = vpop.xlane.xlu0 %622
    %v624 = vmul.f32 %v621, %v399
    %v625 = vmul.f32 %v623, %v399
    %v626 = vsub.f32 %v618, %v624
    %v627 = vsub.f32 %v619, %v625
    %v628 = vmul.f32 %v626, %v626
    %v629 = vmul.f32 %v627, %v627
    %630 = vadd.xlane.f32.xlu0 %v628
    %v631 = vpop.xlane.xlu0 %630
    %632 = vadd.xlane.f32.xlu0 %v629
    %v633 = vpop.xlane.xlu0 %632
    %v634 = vmul.f32 %v631, %v399
    %v635 = vmul.f32 %v633, %v399
    %v636 = vadd.f32 %v634, 1e-05
    %v637 = vadd.f32 %v635, 1e-05
    %v638 = vrsqrt.pop %v636
    %v639 = vmul.f32 %v638, %v636
    %v640 = vmul.f32 %v639, %v638
    %v641 = vmul.f32 0.5, %v640
    %v642 = vsub.f32 1.5, %v641
    %v643 = vmul.f32 %v638, %v642
    %vm644 = vweird.f32 %v636
    %vm645 = vweird.f32 %v638
    %vm646 = vmor %vm644, %vm645
    %v647 = vsel %vm646, %v638, %v643
    %v648 = vrsqrt.pop %v637
    %v649 = vmul.f32 %v648, %v637
    %v650 = vmul.f32 %v649, %v648
    %v651 = vmul.f32 0.5, %v650
    %v652 = vsub.f32 1.5, %v651
    %v653 = vmul.f32 %v648, %v652
    %vm654 = vweird.f32 %v637
    %vm655 = vweird.f32 %v648
    %vm656 = vmor %vm654, %vm655
    %v657 = vsel %vm656, %v648, %v653
    %v658 = vmul.f32 %v626, %v647
    %v659 = vmul.f32 %v627, %v657
    %v660 = vld [vmem:[%s11] sm:$0x1]
    %v662 = vperm.slane %v660, 0
    %v664 = vmul.f32 %v658, %v662
    %v665 = vmul.f32 %v659, %v662
    %v666 = vld [vmem:[%s12] sm:$0x1]
    %v668 = vperm.slane %v666, 0
    %v670 = vadd.f32 %v664, %v668
    %v671 = vadd.f32 %v665, %v668
    %672 = vst [vmem:[#allocation13] sm:$0xff] %v670
    %673 = vst [vmem:[#allocation13 + $0x8] sm:$0xff] %v671
    // Predicated region
    $region78: #{tpu_custom_call.1} parent=1 // pred_check
      _
    $region79: #{tpu_custom_call.1} parent=1 // pred_check_branch
      %675 = sbr.rel (0) target = $region81
    $region80: #{tpu_custom_call.1} parent=1 // pred_region
      %677 = vsyncadd [#allocation4], 0
      %s678 = sshll.u32 [#allocation13], 4
      %s679 = int_to_ptr.vmem [resolvable:$true] %s678
      %s680 = sshll.u32 %s13, 4
      %s681 = int_to_ptr.hbm [resolvable:$true] %s680
      %686 = dma.vmem_to_hbm [thread:$0]  %s679, 256, %s681, [#allocation4], 128, 128, 8
    $region81: #{tpu_custom_call.1} parent=1 // pred_fallthru
      _
    // Predicated region
    $region82: #{tpu_custom_call.1} parent=1 // pred_check
      _
    $region83: #{tpu_custom_call.1} parent=1 // pred_check_branch
      %688 = sbr.rel (0) target = $region85
    $region84: #{tpu_custom_call.1} parent=1 // pred_region
      %690 = dma.done [#allocation4], 256
    $region85: #{tpu_custom_call.1} parent=1 // pred_fallthru
      _
    %691 = vsyncpa [#allocation3], 1
    %692 = vsyncpa [#allocation6], 1
    %693 = vsyncpa [#allocation9], 1
    %694 = vsyncpa [#allocation12], 1
    %695 = vsyncpa [#allocation4], 1

</llo_original>
